<compile_context>
chip_gen: v6e
topology: v6e:2x2x1
jax: 0.10.0
libtpu: 0.0.40
codegen_flags: <defaults>
</compile_context>

<pallas_src>
import functools

import jax
import jax.numpy as jnp
import numpy as np
from jax.experimental import pallas as pl
from jax.experimental.pallas import tpu as pltpu


def _mulde_kernel(t_ref, w_ref, s_ref, idx_ref, pos_ref, lsoft_ref, ls_ref,
                  *, inv_denom, teacher_scale):
    # t_ref     : VMEM [T, TB, K] (f32 or bf16)  raw teacher scores
    # w_ref     : VMEM [T, TB, 1] f32            sigmoid(W_rel^T) (pre-applied)
    # s_ref     : VMEM [TB, K]    (f32 or bf16)  student scores
    # idx_ref   : VMEM [TB, K]    i32            candidate entity ids
    # pos_ref   : VMEM [TB, 1]    i32            positive entity id per row
    # lsoft_ref : VMEM [1, 8, 128] f32 out       per-tile sum of Lsoft elements
    # ls_ref    : VMEM [1, 8, 128] f32 out       per-tile sum of senior-loss elements
    # inv_denom, teacher_scale: static Python floats (1/exp(epoch/5), W_rel.shape[-1])

    # Upcast inside the kernel so callers may hand in bf16 (halves HBM bytes on
    # bandwidth-limited v5e); all arithmetic stays in f32.
    t = t_ref[...].astype(jnp.float32) * w_ref[...]            # scaled teacher scores [T,TB,K]
    s = s_ref[...].astype(jnp.float32)                         # [TB, K]

    # ---- student log-softmax over candidates --------------------------------
    s_sh = s - jnp.max(s, axis=-1, keepdims=True)
    log_q = s_sh - jnp.log(jnp.sum(jnp.exp(s_sh), axis=-1, keepdims=True))   # [TB, K]

    # ---- teacher softmax / log-softmax over candidates ----------------------
    t_sh = t - jnp.max(t, axis=-1, keepdims=True)
    t_exp = jnp.exp(t_sh)
    t_sum = jnp.sum(t_exp, axis=-1, keepdims=True)
    p_t = t_exp * pl.reciprocal(t_sum, approx=True)            # EUP vrcp + VALU mul (no divide)
    log_p_t = t_sh - jnp.log(t_sum)

    # pi[t, b] = mean_k  p_t * (log p_t - log q)    (F.kl_div 'none' then mean(-1))
    pi = jnp.mean(p_t * (log_p_t - log_q[None, :, :]), axis=-1, keepdims=True)   # [T,TB,1]

    # Gate with teacher count (W_rel.shape[-1]) folded in on the tiny [T,TB,1] slab.
    gate = jax.nn.sigmoid(-pi * jnp.float32(inv_denom)) * jnp.float32(teacher_scale)
    Ltop = jnp.sum(t * gate, axis=0)                            # [TB, K]

    # ---- Lsoft: KL(softmax(Ltop) || softmax(s)), mean_k then summed over rows
    lt_sh = Ltop - jnp.max(Ltop, axis=-1, keepdims=True)
    lt_exp = jnp.exp(lt_sh)
    lt_sum = jnp.sum(lt_exp, axis=-1, keepdims=True)
    p_top = lt_exp * pl.reciprocal(lt_sum, approx=True)
    log_p_top = lt_sh - jnp.log(lt_sum)
    lsoft_partial = jnp.sum(p_top * (log_p_top - log_q))        # sum over (TB, K)

    # ---- senior loss ---------------------------------------------------------
    # Stable identity: log(1 - sigmoid(t)) = log_sigmoid(t) - t, so only ONE
    # transcendental chain on the full [T,TB,K] tensor (and no -inf underflow).
    matches = (idx_ref[...] == pos_ref[...])[None, :, :]        # [1,TB,K] -> broadcast over T
    pos_term = jax.nn.log_sigmoid(t)
    result = pos_term - jnp.where(matches, jnp.float32(0.0), t)
    ls_partial = jnp.sum(result)                                # sum over (T, TB, K)

    # Each grid step writes its own lane-dense output block (keeps the batch
    # axis "parallel" for v7x megacore); final means are done in plain JAX.
    lsoft_ref[...] = jnp.full(lsoft_ref.shape, lsoft_partial, dtype=jnp.float32)
    ls_ref[...] = jnp.full(ls_ref.shape, ls_partial, dtype=jnp.float32)


def _pick_batch_tile(T, B, K):
    # Keep one f32 [T, TB, K] working tile under ~2 MiB so double-buffered
    # inputs + live intermediates stay far below the default 32 MiB scoped VMEM
    # on every generation (v7x only has 64 MiB physical VMEM).
    budget = 2 * 1024 * 1024
    for tb in (512, 256, 128, 64, 32, 16):      # multiples of 16: legal for f32 and bf16 tiles
        if B % tb == 0 and T * tb * K * 4 <= budget:
            return tb
    # TODO(synk): very large batches with awkward divisors would need a masked
    # ragged tail; fall back to a single full-batch block for small/odd B.
    return B


def mulde_loss_forward(t_score, s_score, W_rel, epoch, sample, indices, mode,
                       hardloss, hardloss_record, l=0.0, margin=None,
                       subsampling_weight=None, sub_margin=False):
    """Mirrors MulDELoss.forward. Returns (loss, updated_record)."""
    if sub_margin:
        t_score = margin - t_score
        s_score = margin - s_score

    T, B, K = t_score.shape

    positive, _negative = sample
    if mode == 'head-batch':
        pos_idx = positive[:, 0]
    elif mode == 'tail-batch':
        pos_idx = positive[:, 2]
    else:
        raise ValueError(mode)

    # Tiny [B, T] sigmoid runs in plain JAX (keeps a full-size EUP op off the hot tensor).
    w_sig = jax.nn.sigmoid(jnp.transpose(W_rel).astype(jnp.float32))[:, :, None]   # [T, B, 1]
    pos = pos_idx.astype(jnp.int32)[:, None]                                       # [B, 1]

    # epoch is a host Python number in the original module (torch.tensor(epoch/5)),
    # so 1/exp(epoch/5) is baked in as a static constant (one recompile per epoch value).
    inv_denom = float(np.exp(-float(epoch) / 5.0))

    tb = _pick_batch_tile(T, B, K)
    num_tiles = B // tb

    kernel = functools.partial(_mulde_kernel,
                               inv_denom=inv_denom,
                               teacher_scale=float(W_rel.shape[-1]))

    out_slab = jax.ShapeDtypeStruct((num_tiles, 8, 128), jnp.float32)
    lsoft_parts, ls_parts = pl.pallas_call(
        kernel,
        grid=(num_tiles,),
        in_specs=[
            pl.BlockSpec((T, tb, K), lambda i: (0, i, 0)),   # t_score (raw dtype, upcast in-kernel)
            pl.BlockSpec((T, tb, 1), lambda i: (0, i, 0)),   # sigmoid(W_rel^T)
            pl.BlockSpec((tb, K), lambda i: (i, 0)),         # s_score
            pl.BlockSpec((tb, K), lambda i: (i, 0)),         # indices
            pl.BlockSpec((tb, 1), lambda i: (i, 0)),         # positive index
        ],
        out_specs=(
            pl.BlockSpec((1, 8, 128), lambda i: (i, 0, 0)),
            pl.BlockSpec((1, 8, 128), lambda i: (i, 0, 0)),
        ),
        out_shape=(out_slab, out_slab),
        compiler_params=pltpu.CompilerParams(
            dimension_semantics=("parallel",)),              # batch tiles independent -> both TCs on v7x
    )(t_score, w_sig, s_score, indices.astype(jnp.int32), pos)

    Lsoft = jnp.sum(lsoft_parts[:, 0, 0]) / jnp.float32(B * K)       # mean_b(mean_k(.))
    LS = -jnp.sum(ls_parts[:, 0, 0]) / jnp.float32(T * B * K)        # -mean over all elements

    if subsampling_weight is not None:
        Lsoft_final = Lsoft   # original: Lsoft.mean(); kernel partials already give the mean
    else:
        # TODO(synk): the original else-branch multiplies a None weight (would crash in
        # PyTorch); only the reachable semantics (the plain mean) are reproduced here.
        Lsoft_final = Lsoft

    LJ = l * Lsoft_final + (1.0 - l) * hardloss
    loss = LJ + LS

    # Keep JAX scalars in the record (no float() device->host syncs on the hot
    # path); convert to Python numbers outside the training step if needed.
    record = dict(hardloss_record)
    record.update({'Student soft loss': Lsoft_final,
                   'Senior loss': LS,
                   'Junior loss': LJ,
                   'total_loss': loss})
    return loss, record


def _reference(t_score, s_score, W_rel, epoch, pos_idx, indices, l, hardloss):
    """Pure-JAX mirror of the PyTorch forward, for validation."""
    T = t_score.shape[0]
    t = t_score * jax.nn.sigmoid(W_rel.T[:, :, None])
    log_q = jax.nn.log_softmax(s_score, axis=-1)
    p_t = jax.nn.softmax(t, axis=-1)
    pi = jnp.mean(p_t * (jnp.log(p_t) - log_q[None]), axis=-1)
    gate = jax.nn.sigmoid(-pi / jnp.exp(epoch / 5.0))
    Ltop = jnp.sum(t * gate[:, :, None] * T, axis=0)
    p_top = jax.nn.softmax(Ltop, axis=-1)
    Lsoft = jnp.mean(jnp.mean(p_top * (jnp.log(p_top) - log_q), axis=-1))
    matches = indices == pos_idx[:, None]
    result = jnp.where(matches[None], jax.nn.log_sigmoid(t),
                       jnp.log(1.0 - jax.nn.sigmoid(t)))
    LS = -jnp.mean(result)
    LJ = l * Lsoft + (1.0 - l) * hardloss
    return LJ + LS


if __name__ == "__main__":
    key = jax.random.PRNGKey(0)
    T, B, K = 4, 8, 128          # teachers (module hardcodes 4), batch, candidates
    n_ent = 500

    k1, k2, k3, k4, k5 = jax.random.split(key, 5)
    t_score = jax.random.normal(k1, (T, B, K), jnp.float32)
    s_score = jax.random.normal(k2, (B, K), jnp.float32)
    W_rel = jax.random.normal(k3, (B, T), jnp.float32)
    indices = jax.random.randint(k4, (B, K), 0, n_ent, dtype=jnp.int32)
    positive = jax.random.randint(k5, (B, 3), 0, n_ent, dtype=jnp.int32)
    # make sure some candidates actually match the positive tail entity
    positive = positive.at[:, 2].set(indices[:, 0])
    negative = jnp.zeros((B, K), jnp.int32)
    sample = (positive, negative)

    epoch = 3.0
    hardloss = 0.5
    l = 0.3
    subsampling_weight = jnp.ones((B,), jnp.float32)

    loss, record = mulde_loss_forward(
        t_score, s_score, W_rel, epoch, sample, indices, 'tail-batch',
        hardloss, {}, l=l, subsampling_weight=subsampling_weight,
        sub_margin=False)
    loss = jax.block_until_ready(jnp.asarray(loss))

    # validate against the pure-JAX reference (tolerance covers approx reciprocal)
    ref_loss = _reference(t_score, s_score, W_rel, epoch, positive[:, 2],
                          indices, l, hardloss)
    ref_loss = jax.block_until_ready(ref_loss)
    assert np.allclose(np.asarray(loss), np.asarray(ref_loss),
                       rtol=2e-3, atol=1e-3), (loss, ref_loss)

    print("KERNEL_OK")
</pallas_src>

<mosaic_0001>
module attributes {stable_mosaic.version = 11 : i64} {
  func.func @_mulde_kernel(%arg0: i32, %arg1: memref<4x8x128xf32, #tpu.memory_space<vmem>>, %arg2: memref<4x8x1xf32, #tpu.memory_space<vmem>>, %arg3: memref<8x128xf32, #tpu.memory_space<vmem>>, %arg4: memref<8x128xi32, #tpu.memory_space<vmem>>, %arg5: memref<8x1xi32, #tpu.memory_space<vmem>>, %arg6: memref<1x8x128xf32, #tpu.memory_space<vmem>>, %arg7: memref<1x8x128xf32, #tpu.memory_space<vmem>>) attributes {dimension_semantics = [#tpu.dimension_semantics<parallel>], iteration_bounds = array<i64: 1>, scalar_prefetch = 0 : i64, scratch_operands = 0 : i64, tpu.core_type = #tpu.core_type<tc>, window_params = [{transform_indices = @transform_0, window_bounds = array<i64: 4, 8, 128>}, {transform_indices = @transform_1, window_bounds = array<i64: 4, 8, 1>}, {transform_indices = @transform_2, window_bounds = array<i64: 8, 128>}, {transform_indices = @transform_3, window_bounds = array<i64: 8, 128>}, {transform_indices = @transform_4, window_bounds = array<i64: 8, 1>}, {transform_indices = @transform_5, window_bounds = array<i64: 1, 8, 128>}, {transform_indices = @transform_6, window_bounds = array<i64: 1, 8, 128>}]} {
    %c0 = arith.constant 0 : index
    %c0_0 = arith.constant 0 : index
    %c0_1 = arith.constant 0 : index
    %0 = vector.load %arg1[%c0, %c0_0, %c0_1] : memref<4x8x128xf32, #tpu.memory_space<vmem>>, vector<4x8x128xf32>
    %c0_2 = arith.constant 0 : index
    %c0_3 = arith.constant 0 : index
    %c0_4 = arith.constant 0 : index
    %1 = vector.load %arg2[%c0_2, %c0_3, %c0_4] : memref<4x8x1xf32, #tpu.memory_space<vmem>>, vector<4x8x1xf32>
    %2 = vector.broadcast %1 : vector<4x8x1xf32> to vector<4x8x128xf32>
    %3 = arith.mulf %0, %2 : vector<4x8x128xf32>
    %c0_5 = arith.constant 0 : index
    %c0_6 = arith.constant 0 : index
    %4 = vector.load %arg3[%c0_5, %c0_6] : memref<8x128xf32, #tpu.memory_space<vmem>>, vector<8x128xf32>
    %cst = arith.constant dense<0xFF800000> : vector<8xf32>
    %5 = vector.multi_reduction <maximumf>, %4, %cst [1] : vector<8x128xf32> to vector<8xf32>
    %6 = vector.shape_cast %5 : vector<8xf32> to vector<8x1xf32>
    %7 = vector.broadcast %6 : vector<8x1xf32> to vector<8x128xf32>
    %8 = arith.subf %4, %7 : vector<8x128xf32>
    %9 = math.exp %8 : vector<8x128xf32>
    %cst_7 = arith.constant dense<0.000000e+00> : vector<8xf32>
    %10 = vector.multi_reduction <add>, %9, %cst_7 [1] : vector<8x128xf32> to vector<8xf32>
    %11 = vector.shape_cast %10 : vector<8xf32> to vector<8x1xf32>
    %12 = math.log %11 : vector<8x1xf32>
    %13 = vector.broadcast %12 : vector<8x1xf32> to vector<8x128xf32>
    %14 = arith.subf %8, %13 : vector<8x128xf32>
    %cst_8 = arith.constant dense<0xFF800000> : vector<4x8xf32>
    %15 = vector.multi_reduction <maximumf>, %3, %cst_8 [2] : vector<4x8x128xf32> to vector<4x8xf32>
    %16 = vector.shape_cast %15 : vector<4x8xf32> to vector<4x8x1xf32>
    %17 = vector.broadcast %16 : vector<4x8x1xf32> to vector<4x8x128xf32>
    %18 = arith.subf %3, %17 : vector<4x8x128xf32>
    %19 = math.exp %18 : vector<4x8x128xf32>
    %cst_9 = arith.constant dense<0.000000e+00> : vector<4x8xf32>
    %20 = vector.multi_reduction <add>, %19, %cst_9 [2] : vector<4x8x128xf32> to vector<4x8xf32>
    %21 = vector.shape_cast %20 : vector<4x8xf32> to vector<4x8x1xf32>
    %22 = tpu.reciprocal %21 {approx = true} : vector<4x8x1xf32> -> vector<4x8x1xf32>
    %23 = vector.broadcast %22 : vector<4x8x1xf32> to vector<4x8x128xf32>
    %24 = arith.mulf %19, %23 : vector<4x8x128xf32>
    %25 = math.log %21 : vector<4x8x1xf32>
    %26 = vector.broadcast %25 : vector<4x8x1xf32> to vector<4x8x128xf32>
    %27 = arith.subf %18, %26 : vector<4x8x128xf32>
    %28 = vector.shape_cast %14 : vector<8x128xf32> to vector<1x8x128xf32>
    %29 = vector.broadcast %28 : vector<1x8x128xf32> to vector<4x8x128xf32>
    %30 = arith.subf %27, %29 : vector<4x8x128xf32>
    %31 = arith.mulf %24, %30 : vector<4x8x128xf32>
    %cst_10 = arith.constant dense<0.000000e+00> : vector<4x8xf32>
    %32 = vector.multi_reduction <add>, %31, %cst_10 [2] : vector<4x8x128xf32> to vector<4x8xf32>
    %33 = vector.shape_cast %32 : vector<4x8xf32> to vector<4x8x1xf32>
    %cst_11 = arith.constant 1.280000e+02 : f32
    %34 = vector.broadcast %cst_11 : f32 to vector<4x8x1xf32>
    %35 = arith.divf %33, %34 : vector<4x8x1xf32>
    %cst_12 = arith.constant 0.000000e+00 : f32
    %36 = vector.broadcast %cst_12 : f32 to vector<4x8x1xf32>
    %37 = arith.subf %36, %35 : vector<4x8x1xf32>
    %cst_13 = arith.constant 0.548811615 : f32
    %38 = vector.broadcast %cst_13 : f32 to vector<4x8x1xf32>
    %39 = arith.mulf %37, %38 : vector<4x8x1xf32>
    %40 = arith.negf %39 : vector<4x8x1xf32>
    %41 = math.exp %40 : vector<4x8x1xf32>
    %cst_14 = arith.constant 1.000000e+00 : f32
    %42 = vector.broadcast %cst_14 : f32 to vector<4x8x1xf32>
    %43 = arith.addf %42, %41 : vector<4x8x1xf32>
    %44 = arith.divf %42, %43 : vector<4x8x1xf32>
    %cst_15 = arith.constant 4.000000e+00 : f32
    %45 = vector.broadcast %cst_15 : f32 to vector<4x8x1xf32>
    %46 = arith.mulf %44, %45 : vector<4x8x1xf32>
    %47 = vector.broadcast %46 : vector<4x8x1xf32> to vector<4x8x128xf32>
    %48 = arith.mulf %3, %47 : vector<4x8x128xf32>
    %cst_16 = arith.constant dense<0.000000e+00> : vector<8x128xf32>
    %49 = vector.multi_reduction <add>, %48, %cst_16 [0] : vector<4x8x128xf32> to vector<8x128xf32>
    %cst_17 = arith.constant dense<0xFF800000> : vector<8xf32>
    %50 = vector.multi_reduction <maximumf>, %49, %cst_17 [1] : vector<8x128xf32> to vector<8xf32>
    %51 = vector.shape_cast %50 : vector<8xf32> to vector<8x1xf32>
    %52 = vector.broadcast %51 : vector<8x1xf32> to vector<8x128xf32>
    %53 = arith.subf %49, %52 : vector<8x128xf32>
    %54 = math.exp %53 : vector<8x128xf32>
    %cst_18 = arith.constant dense<0.000000e+00> : vector<8xf32>
    %55 = vector.multi_reduction <add>, %54, %cst_18 [1] : vector<8x128xf32> to vector<8xf32>
    %56 = vector.shape_cast %55 : vector<8xf32> to vector<8x1xf32>
    %57 = tpu.reciprocal %56 {approx = true} : vector<8x1xf32> -> vector<8x1xf32>
    %58 = vector.broadcast %57 : vector<8x1xf32> to vector<8x128xf32>
    %59 = arith.mulf %54, %58 : vector<8x128xf32>
    %60 = math.log %56 : vector<8x1xf32>
    %61 = vector.broadcast %60 : vector<8x1xf32> to vector<8x128xf32>
    %62 = arith.subf %53, %61 : vector<8x128xf32>
    %63 = arith.subf %62, %14 : vector<8x128xf32>
    %64 = arith.mulf %59, %63 : vector<8x128xf32>
    %65 = vector.shape_cast %64 : vector<8x128xf32> to vector<1x8x128xf32>
    %cst_19 = arith.constant dense<0.000000e+00> : vector<1xf32>
    %66 = vector.multi_reduction <add>, %65, %cst_19 [1, 2] : vector<1x8x128xf32> to vector<1xf32>
    %67 = vector.shape_cast %66 : vector<1xf32> to vector<1x1x1xf32>
    %68 = vector.extract %67[0, 0, 0] : f32 from vector<1x1x1xf32>
    %c0_20 = arith.constant 0 : index
    %c0_21 = arith.constant 0 : index
    %69 = vector.load %arg4[%c0_20, %c0_21] : memref<8x128xi32, #tpu.memory_space<vmem>>, vector<8x128xi32>
    %c0_22 = arith.constant 0 : index
    %c0_23 = arith.constant 0 : index
    %70 = vector.load %arg5[%c0_22, %c0_23] : memref<8x1xi32, #tpu.memory_space<vmem>>, vector<8x1xi32>
    %71 = vector.broadcast %70 : vector<8x1xi32> to vector<8x128xi32>
    %72 = arith.cmpi eq, %69, %71 : vector<8x128xi32>
    %73 = vector.shape_cast %72 : vector<8x128xi1> to vector<1x8x128xi1>
    %cst_24 = arith.constant 0.000000e+00 : f32
    %74 = vector.broadcast %cst_24 : f32 to vector<4x8x128xf32>
    %75 = arith.subf %74, %3 : vector<4x8x128xf32>
    %cst_25 = arith.constant 0.000000e+00 : f32
    %76 = vector.broadcast %cst_25 : f32 to vector<4x8x128xf32>
    %77 = arith.maximumf %75, %76 : vector<4x8x128xf32>
    %78 = vector.broadcast %cst_25 : f32 to vector<4x8x128xf32>
    %79 = arith.subf %75, %78 : vector<4x8x128xf32>
    %80 = arith.cmpf one, %79, %79 : vector<4x8x128xf32>
    %81 = vector.broadcast %cst_25 : f32 to vector<4x8x128xf32>
    %82 = arith.addf %75, %81 : vector<4x8x128xf32>
    %83 = math.absf %79 : vector<4x8x128xf32>
    %cst_26 = arith.constant 0.000000e+00 : f32
    %84 = vector.broadcast %cst_26 : f32 to vector<4x8x128xf32>
    %85 = arith.subf %84, %83 : vector<4x8x128xf32>
    %86 = math.exp %85 : vector<4x8x128xf32>
    %87 = math.log1p %86 : vector<4x8x128xf32>
    %88 = arith.addf %77, %87 : vector<4x8x128xf32>
    %89 = arith.select %80, %82, %88 : vector<4x8x128xi1>, vector<4x8x128xf32>
    %cst_27 = arith.constant 0.000000e+00 : f32
    %90 = vector.broadcast %cst_27 : f32 to vector<4x8x128xf32>
    %91 = arith.subf %90, %89 : vector<4x8x128xf32>
    %cst_28 = arith.constant 0.000000e+00 : f32
    %92 = vector.shape_cast %73 : vector<1x8x128xi1> to vector<1x8x128xi1>
    %93 = vector.broadcast %92 : vector<1x8x128xi1> to vector<4x8x128xi1>
    %94 = vector.broadcast %cst_28 : f32 to vector<4x8x128xf32>
    %95 = arith.select %93, %94, %3 : vector<4x8x128xi1>, vector<4x8x128xf32>
    %96 = arith.subf %91, %95 : vector<4x8x128xf32>
    %97 = vector.shape_cast %96 : vector<4x8x128xf32> to vector<1x4x8x128xf32>
    %cst_29 = arith.constant dense<0.000000e+00> : vector<1xf32>
    %98 = vector.multi_reduction <add>, %97, %cst_29 [1, 2, 3] : vector<1x4x8x128xf32> to vector<1xf32>
    %99 = vector.shape_cast %98 : vector<1xf32> to vector<1x1x1x1xf32>
    %100 = vector.extract %99[0, 0, 0, 0] : f32 from vector<1x1x1x1xf32>
    %101 = vector.broadcast %68 : f32 to vector<1x8x128xf32>
    %c0_30 = arith.constant 0 : index
    %c0_31 = arith.constant 0 : index
    %c0_32 = arith.constant 0 : index
    %102 = vector.load %arg6[%c0_30, %c0_31, %c0_32] : memref<1x8x128xf32, #tpu.memory_space<vmem>>, vector<1x8x128xf32>
    tpu.vector_store %arg6[%c0_30, %c0_31, %c0_32], %101 {strides = array<i32>} : memref<1x8x128xf32, #tpu.memory_space<vmem>>, vector<1x8x128xf32>,
    %103 = vector.broadcast %100 : f32 to vector<1x8x128xf32>
    %c0_33 = arith.constant 0 : index
    %c0_34 = arith.constant 0 : index
    %c0_35 = arith.constant 0 : index
    %104 = vector.load %arg7[%c0_33, %c0_34, %c0_35] : memref<1x8x128xf32, #tpu.memory_space<vmem>>, vector<1x8x128xf32>
    tpu.vector_store %arg7[%c0_33, %c0_34, %c0_35], %103 {strides = array<i32>} : memref<1x8x128xf32, #tpu.memory_space<vmem>>, vector<1x8x128xf32>,
    return
  }
  func.func @transform_0(%arg0: i32) -> (i32, i32, i32) {
    %c0_i32 = arith.constant 0 : i32
    %c0_i32_0 = arith.constant 0 : i32
    %c0_i32_1 = arith.constant 0 : i32
    return %c0_i32, %arg0, %c0_i32_0 : i32, i32, i32
  }
  func.func @transform_1(%arg0: i32) -> (i32, i32, i32) {
    %c0_i32 = arith.constant 0 : i32
    %c0_i32_0 = arith.constant 0 : i32
    %c0_i32_1 = arith.constant 0 : i32
    return %c0_i32, %arg0, %c0_i32_0 : i32, i32, i32
  }
  func.func @transform_2(%arg0: i32) -> (i32, i32) {
    %c0_i32 = arith.constant 0 : i32
    %c0_i32_0 = arith.constant 0 : i32
    return %arg0, %c0_i32 : i32, i32
  }
  func.func @transform_3(%arg0: i32) -> (i32, i32) {
    %c0_i32 = arith.constant 0 : i32
    %c0_i32_0 = arith.constant 0 : i32
    return %arg0, %c0_i32 : i32, i32
  }
  func.func @transform_4(%arg0: i32) -> (i32, i32) {
    %c0_i32 = arith.constant 0 : i32
    %c0_i32_0 = arith.constant 0 : i32
    return %arg0, %c0_i32 : i32, i32
  }
  func.func @transform_5(%arg0: i32) -> (i32, i32, i32) {
    %c0_i32 = arith.constant 0 : i32
    %c0_i32_0 = arith.constant 0 : i32
    %c0_i32_1 = arith.constant 0 : i32
    return %arg0, %c0_i32, %c0_i32_0 : i32, i32, i32
  }
  func.func @transform_6(%arg0: i32) -> (i32, i32, i32) {
    %c0_i32 = arith.constant 0 : i32
    %c0_i32_0 = arith.constant 0 : i32
    %c0_i32_1 = arith.constant 0 : i32
    return %arg0, %c0_i32, %c0_i32_0 : i32, i32, i32
  }
}

</mosaic_0001>

<llo_original>
// kernel: tpu_custom_call.1
$region0: #{tpu_custom_call.1}
  #allocation0 [shape = 'u32[]', space=smem, size = 0x4, offset = 0x4, fixed_abs, tag = 'smem constant byte address 0x4 - core index']
  #allocation1 [shape = 'u32[144,128]{1,0:T(1,128)}', space=vmem, size = 0x12000, scoped, tag = 'internal scratch']
  %s0 = inlined_call_operand.vmem [shape: f32[4,8,128], index: 0, kind: input, shape index: {}]
  %s1 = inlined_call_operand.vmem [shape: f32[4,8,1], index: 1, kind: input, shape index: {}]
  %s2 = inlined_call_operand.vmem [shape: f32[8,128], index: 2, kind: input, shape index: {}]
  %s3 = inlined_call_operand.vmem [shape: s32[8,128], index: 3, kind: input, shape index: {}]
  %s4 = inlined_call_operand.vmem [shape: s32[8,1], index: 4, kind: input, shape index: {}]
  %s5 = inlined_call_operand.hbm [shape: f32[1,8,128], index: 5, kind: output, shape index: {0}]
  %s6 = inlined_call_operand.hbm [shape: f32[1,8,128], index: 6, kind: output, shape index: {1}]
  %7 = xla_tuple %s5, %s6
  %s8 = sld [smem:[#allocation0]]
  $region38: #{tpu_custom_call.1} parent=0
    _
  %s10 = ssub.s32 1, %s8
  %s11 = scalar_select 0, %s10, %s8
  $region1: #{tpu_custom_call.1} parent=0
    #allocation2 [shape = 'u8[4096]{0}', space=vmem, size = 0x1000, scoped, tag = 'output window, operand 0, single buffered']
    #allocation3 [shape = 's32[1]{0}', space=sflag, size = 0x4, scoped, tag = 'scoped memory for tpu_custom_call.1']
    #allocation4 [shape = 'u8[4096]{0}', space=vmem, size = 0x1000, scoped, tag = 'output window, operand 1, single buffered']
    #allocation5 [shape = 's32[1]{0}', space=sflag, size = 0x4, scoped, tag = 'scoped memory for tpu_custom_call.1']
    %12 = vsyncpa [#allocation3], 0
    %13 = vsyncpa [#allocation5], 0
    // Predicated region
    $region2: #{tpu_custom_call.1} parent=1 // pred_check
      _
    $region3: #{tpu_custom_call.1} parent=1 // pred_check_branch
      %15 = sbr.rel (0) target = $region5
    $region4: #{tpu_custom_call.1} parent=1 // pred_region
      _
    $region5: #{tpu_custom_call.1} parent=1 // pred_fallthru
      _
    // Predicated region
    $region6: #{tpu_custom_call.1} parent=1 // pred_check
      _
    $region7: #{tpu_custom_call.1} parent=1 // pred_check_branch
      %17 = sbr.rel (0) target = $region9
    $region8: #{tpu_custom_call.1} parent=1 // pred_region
      _
    $region9: #{tpu_custom_call.1} parent=1 // pred_fallthru
      _
    // Predicated region
    $region10: #{tpu_custom_call.1} parent=1 // pred_check
      _
    $region11: #{tpu_custom_call.1} parent=1 // pred_check_branch
      %19 = sbr.rel (0) target = $region13
    $region12: #{tpu_custom_call.1} parent=1 // pred_region
      _
    $region13: #{tpu_custom_call.1} parent=1 // pred_fallthru
      _
    // Predicated region
    $region14: #{tpu_custom_call.1} parent=1 // pred_check
      _
    $region15: #{tpu_custom_call.1} parent=1 // pred_check_branch
      %21 = sbr.rel (0) target = $region17
    $region16: #{tpu_custom_call.1} parent=1 // pred_region
      _
    $region17: #{tpu_custom_call.1} parent=1 // pred_fallthru
      _
    // Predicated region
    $region18: #{tpu_custom_call.1} parent=1 // pred_check
      _
    $region19: #{tpu_custom_call.1} parent=1 // pred_check_branch
      %23 = sbr.rel (0) target = $region21
    $region20: #{tpu_custom_call.1} parent=1 // pred_region
      _
    $region21: #{tpu_custom_call.1} parent=1 // pred_fallthru
      _
    %v24 = vld [vmem:[%s0] sm:$0xff]
    %v25 = vld [vmem:[%s0 + $0x8] sm:$0xff]
    %v26 = vld [vmem:[%s0 + $0x10] sm:$0xff]
    %v27 = vld [vmem:[%s0 + $0x18] sm:$0xff]
    %v28 = vld [vmem:[%s1] sm:$0xff]
    %v29 = vld [vmem:[%s1 + $0x8] sm:$0xff]
    %v30 = vld [vmem:[%s1 + $0x10] sm:$0xff]
    %v31 = vld [vmem:[%s1 + $0x18] sm:$0xff]
    %33 = vset.pattern.permute.xlu0 0
    %34 = vperm.xlu0 %33, %v28
    %v35 = vpop.permute.xlu0 %34
    %38 = vset.pattern.permute.xlu0 0
    %39 = vperm.xlu0 %38, %v29
    %v40 = vpop.permute.xlu0 %39
    %43 = vset.pattern.permute.xlu0 0
    %44 = vperm.xlu0 %43, %v30
    %v45 = vpop.permute.xlu0 %44
    %48 = vset.pattern.permute.xlu0 0
    %49 = vperm.xlu0 %48, %v31
    %v50 = vpop.permute.xlu0 %49
    %v52 = vmul.f32 %v24, %v35
    %v53 = vmul.f32 %v25, %v40
    %v54 = vmul.f32 %v26, %v45
    %v55 = vmul.f32 %v27, %v50
    %v56 = vld [vmem:[%s2] sm:$0xff]
    %57 = vmax.xlane.f32.xlu0 %v56
    %v58 = vpop.xlane.xlu0 %57
    %v59 = vsub.f32 %v56, %v58
    %v60 = vmul.f32 %v59, 1.442695
    %v61 = vpow.pop %v60
    %62 = vadd.xlane.f32.xlu0 %v61
    %v63 = vpop.xlane.xlu0 %62
    %v64 = vlog2.pop %v63
    %v65 = vmul.f32 %v64, 0.6931472
    %v66 = vsub.f32 %v59, %v65
    %67 = vmax.xlane.f32.xlu0 %v52
    %v68 = vpop.xlane.xlu0 %67
    %69 = vmax.xlane.f32.xlu0 %v53
    %v70 = vpop.xlane.xlu0 %69
    %71 = vmax.xlane.f32.xlu0 %v54
    %v72 = vpop.xlane.xlu0 %71
    %73 = vmax.xlane.f32.xlu0 %v55
    %v74 = vpop.xlane.xlu0 %73
    %v75 = vsub.f32 %v52, %v68
    %v76 = vsub.f32 %v53, %v70
    %v77 = vsub.f32 %v54, %v72
    %v78 = vsub.f32 %v55, %v74
    %v79 = vmul.f32 %v75, 1.442695
    %v80 = vpow.pop %v79
    %v81 = vmul.f32 %v76, 1.442695
    %v82 = vpow.pop %v81
    %v83 = vmul.f32 %v77, 1.442695
    %v84 = vpow.pop %v83
    %v85 = vmul.f32 %v78, 1.442695
    %v86 = vpow.pop %v85
    %87 = vadd.xlane.f32.xlu0 %v80
    %v88 = vpop.xlane.xlu0 %87
    %89 = vadd.xlane.f32.xlu0 %v82
    %v90 = vpop.xlane.xlu0 %89
    %91 = vadd.xlane.f32.xlu0 %v84
    %v92 = vpop.xlane.xlu0 %91
    %93 = vadd.xlane.f32.xlu0 %v86
    %v94 = vpop.xlane.xlu0 %93
    %v95 = vrcp.pop %v88
    %v96 = vrcp.pop %v90
    %v97 = vrcp.pop %v92
    %v98 = vrcp.pop %v94
    %v99 = vmul.f32 %v80, %v95
    %v100 = vmul.f32 %v82, %v96
    %v101 = vmul.f32 %v84, %v97
    %v102 = vmul.f32 %v86, %v98
    %v103 = vlog2.pop %v88
    %v104 = vmul.f32 %v103, 0.6931472
    %v105 = vlog2.pop %v90
    %v106 = vmul.f32 %v105, 0.6931472
    %v107 = vlog2.pop %v92
    %v108 = vmul.f32 %v107, 0.6931472
    %v109 = vlog2.pop %v94
    %v110 = vmul.f32 %v109, 0.6931472
    %v111 = vsub.f32 %v75, %v104
    %v112 = vsub.f32 %v76, %v106
    %v113 = vsub.f32 %v77, %v108
    %v114 = vsub.f32 %v78, %v110
    %v115 = vsub.f32 %v111, %v66
    %v116 = vsub.f32 %v112, %v66
    %v117 = vsub.f32 %v113, %v66
    %v118 = vsub.f32 %v114, %v66
    %v119 = vmul.f32 %v99, %v115
    %v120 = vmul.f32 %v100, %v116
    %v121 = vmul.f32 %v101, %v117
    %v122 = vmul.f32 %v102, %v118
    %123 = vadd.xlane.f32.xlu0 %v119
    %v124 = vpop.xlane.xlu0 %123
    %125 = vadd.xlane.f32.xlu0 %v120
    %v126 = vpop.xlane.xlu0 %125
    %127 = vadd.xlane.f32.xlu0 %v121
    %v128 = vpop.xlane.xlu0 %127
    %129 = vadd.xlane.f32.xlu0 %v122
    %v130 = vpop.xlane.xlu0 %129
    %v131 = vrcp.pop 128.0
    %v132 = vmul.f32 %v124, %v131
    %v133 = vmul.f32 %v126, %v131
    %v134 = vmul.f32 %v128, %v131
    %v135 = vmul.f32 %v130, %v131
    %v136 = vsub.f32 0.0, %v132
    %v137 = vsub.f32 0.0, %v133
    %v138 = vsub.f32 0.0, %v134
    %v139 = vsub.f32 0.0, %v135
    %v140 = vmul.f32 %v136, 0.5488116
    %v141 = vmul.f32 %v137, 0.5488116
    %v142 = vmul.f32 %v138, 0.5488116
    %v143 = vmul.f32 %v139, 0.5488116
    %v144 = vxor.u32 %v140, 2147483648
    %v145 = vxor.u32 %v141, 2147483648
    %v146 = vxor.u32 %v142, 2147483648
    %v147 = vxor.u32 %v143, 2147483648
    %v148 = vmul.f32 %v144, 1.442695
    %v149 = vpow.pop %v148
    %v150 = vmul.f32 %v145, 1.442695
    %v151 = vpow.pop %v150
    %v152 = vmul.f32 %v146, 1.442695
    %v153 = vpow.pop %v152
    %v154 = vmul.f32 %v147, 1.442695
    %v155 = vpow.pop %v154
    %v156 = vadd.f32 %v149, 1.0
    %v157 = vadd.f32 %v151, 1.0
    %v158 = vadd.f32 %v153, 1.0
    %v159 = vadd.f32 %v155, 1.0
    %v160 = vrcp.pop %v156
    %v161 = vmul.f32 1.0, %v160
    %v162 = vrcp.pop %v157
    %v163 = vmul.f32 1.0, %v162
    %v164 = vrcp.pop %v158
    %v165 = vmul.f32 1.0, %v164
    %v166 = vrcp.pop %v159
    %v167 = vmul.f32 1.0, %v166
    %v168 = vmul.f32 %v161, 4.0
    %v169 = vmul.f32 %v163, 4.0
    %v170 = vmul.f32 %v165, 4.0
    %v171 = vmul.f32 %v167, 4.0
    %v172 = vmul.f32 %v52, %v168
    %v173 = vmul.f32 %v53, %v169
    %v174 = vmul.f32 %v54, %v170
    %v175 = vmul.f32 %v55, %v171
    %v176 = vadd.f32 %v172, %v173
    %v177 = vadd.f32 %v176, %v174
    %v178 = vadd.f32 %v177, %v175
    %179 = vmax.xlane.f32.xlu0 %v178
    %v180 = vpop.xlane.xlu0 %179
    %v181 = vsub.f32 %v178, %v180
    %v182 = vmul.f32 %v181, 1.442695
    %v183 = vpow.pop %v182
    %184 = vadd.xlane.f32.xlu0 %v183
    %v185 = vpop.xlane.xlu0 %184
    %v186 = vrcp.pop %v185
    %v187 = vmul.f32 %v183, %v186
    %v188 = vlog2.pop %v185
    %v189 = vmul.f32 %v188, 0.6931472
    %v190 = vsub.f32 %v181, %v189
    %v191 = vsub.f32 %v190, %v66
    %v192 = vmul.f32 %v187, %v191
    %193 = vadd.xlane.f32.xlu0 %v192
    %v194 = vpop.xlane.xlu0 %193
    %v195 = vrot.slane %v194, 4
    %v196 = vadd.f32 %v194, %v195
    %v197 = vrot.slane %v196, 2
    %v198 = vadd.f32 %v196, %v197
    %v199 = vrot.slane %v198, 1
    %v200 = vadd.f32 %v198, %v199
    %s201 = vtos %v200
    %v202 = vld [vmem:[%s3] sm:$0xff]
    %v203 = vld [vmem:[%s4] sm:$0xff]
    %204 = vset.pattern.permute.xlu0 0
    %205 = vperm.xlu0 %204, %v203
    %v206 = vpop.permute.xlu0 %205
    %vm207 = vcmp.eq.s32.totalorder %v202, %v206
    %v208 = vsub.f32 0.0, %v52
    %v209 = vsub.f32 0.0, %v53
    %v210 = vsub.f32 0.0, %v54
    %v211 = vsub.f32 0.0, %v55
    %v212 = vmax.f32 %v208, 0.0
    %v213 = vmax.f32 %v209, 0.0
    %v214 = vmax.f32 %v210, 0.0
    %v215 = vmax.f32 %v211, 0.0
    %vm216 = vcmp.ne.f32.partialorder %v208, %v208
    %vm217 = vcmp.ne.f32.partialorder %v209, %v209
    %vm218 = vcmp.ne.f32.partialorder %v210, %v210
    %vm219 = vcmp.ne.f32.partialorder %v211, %v211
    %v220 = vadd.f32 %v208, 0.0
    %v221 = vadd.f32 %v209, 0.0
    %v222 = vadd.f32 %v210, 0.0
    %v223 = vadd.f32 %v211, 0.0
    %v224 = vand.u32 2147483647, %v208
    %v225 = vand.u32 2147483647, %v209
    %v226 = vand.u32 2147483647, %v210
    %v227 = vand.u32 2147483647, %v211
    %v228 = vsub.f32 0.0, %v224
    %v229 = vsub.f32 0.0, %v225
    %v230 = vsub.f32 0.0, %v226
    %v231 = vsub.f32 0.0, %v227
    %v232 = vmul.f32 %v228, 1.442695
    %v233 = vpow.pop %v232
    %v234 = vmul.f32 %v229, 1.442695
    %v235 = vpow.pop %v234
    %v236 = vmul.f32 %v230, 1.442695
    %v237 = vpow.pop %v236
    %v238 = vmul.f32 %v231, 1.442695
    %v239 = vpow.pop %v238
    %v240 = vadd.f32 %v233, 1.0
    %v241 = vlog2.pop %v240
    %v242 = vmul.f32 %v241, 0.6931472
    %v243 = vmul.f32 -0.5, %v233
    %v244 = vadd.f32 %v243, 1.0
    %v245 = vmul.f32 %v244, %v233
    %v246 = vand.u32 2147483647, %v233
    %vm247 = vcmp.lt.f32.partialorder %v246, 0.0004427343
    %v248 = vsel %vm247, %v245, %v242
    %v249 = vadd.f32 %v235, 1.0
    %v250 = vlog2.pop %v249
    %v251 = vmul.f32 %v250, 0.6931472
    %v252 = vmul.f32 -0.5, %v235
    %v253 = vadd.f32 %v252, 1.0
    %v254 = vmul.f32 %v253, %v235
    %v255 = vand.u32 2147483647, %v235
    %vm256 = vcmp.lt.f32.partialorder %v255, 0.0004427343
    %v257 = vsel %vm256, %v254, %v251
    %v258 = vadd.f32 %v237, 1.0
    %v259 = vlog2.pop %v258
    %v260 = vmul.f32 %v259, 0.6931472
    %v261 = vmul.f32 -0.5, %v237
    %v262 = vadd.f32 %v261, 1.0
    %v263 = vmul.f32 %v262, %v237
    %v264 = vand.u32 2147483647, %v237
    %vm265 = vcmp.lt.f32.partialorder %v264, 0.0004427343
    %v266 = vsel %vm265, %v263, %v260
    %v267 = vadd.f32 %v239, 1.0
    %v268 = vlog2.pop %v267
    %v269 = vmul.f32 %v268, 0.6931472
    %v270 = vmul.f32 -0.5, %v239
    %v271 = vadd.f32 %v270, 1.0
    %v272 = vmul.f32 %v271, %v239
    %v273 = vand.u32 2147483647, %v239
    %vm274 = vcmp.lt.f32.partialorder %v273, 0.0004427343
    %v275 = vsel %vm274, %v272, %v269
    %v276 = vadd.f32 %v212, %v248
    %v277 = vadd.f32 %v213, %v257
    %v278 = vadd.f32 %v214, %v266
    %v279 = vadd.f32 %v215, %v275
    %v280 = vsel %vm216, %v220, %v276
    %v281 = vsel %vm217, %v221, %v277
    %v282 = vsel %vm218, %v222, %v278
    %v283 = vsel %vm219, %v223, %v279
    %v284 = vsub.f32 0.0, %v280
    %v285 = vsub.f32 0.0, %v281
    %v286 = vsub.f32 0.0, %v282
    %v287 = vsub.f32 0.0, %v283
    %v288 = vsel %vm207, 1, 0
    %vm289 = vcmp.eq.s32.totalorder %v288, 1
    %v290 = vsel %vm289, 0.0, %v52
    %v291 = vsel %vm289, 0.0, %v53
    %v292 = vsel %vm289, 0.0, %v54
    %v293 = vsel %vm289, 0.0, %v55
    %v294 = vsub.f32 %v284, %v290
    %v295 = vsub.f32 %v285, %v291
    %v296 = vsub.f32 %v286, %v292
    %v297 = vsub.f32 %v287, %v293
    %v298 = vadd.f32 %v294, %v295
    %v299 = vadd.f32 %v298, %v296
    %v300 = vadd.f32 %v299, %v297
    %301 = vadd.xlane.f32.xlu0 %v300
    %v302 = vpop.xlane.xlu0 %301
    %v303 = vrot.slane %v302, 4
    %v304 = vadd.f32 %v302, %v303
    %v305 = vrot.slane %v304, 2
    %v306 = vadd.f32 %v304, %v305
    %v307 = vrot.slane %v306, 1
    %v308 = vadd.f32 %v306, %v307
    %s309 = vtos %v308
    %v310 = vstv %s201
    %311 = vst [vmem:[#allocation2] sm:$0xff] %v310
    %v312 = vstv %s309
    %313 = vst [vmem:[#allocation4] sm:$0xff] %v312
    // Predicated region
    $region22: #{tpu_custom_call.1} parent=1 // pred_check
      _
    $region23: #{tpu_custom_call.1} parent=1 // pred_check_branch
      %315 = sbr.rel (0) target = $region25
    $region24: #{tpu_custom_call.1} parent=1 // pred_region
      %s317 = ssub.s32 128, 128
      %318 = vsyncadd [#allocation3], %s317
      %s320 = sshll.u32 [#allocation2], 4
      %s321 = int_to_ptr.vmem [resolvable:$true] %s320
      %323 = dma.vmem_to_hbm [thread:$0]  %s321, 128, %s5, [#allocation3]
    $region25: #{tpu_custom_call.1} parent=1 // pred_fallthru
      _
    // Predicated region
    $region26: #{tpu_custom_call.1} parent=1 // pred_check
      _
    $region27: #{tpu_custom_call.1} parent=1 // pred_check_branch
      %325 = sbr.rel (0) target = $region29
    $region28: #{tpu_custom_call.1} parent=1 // pred_region
      %s327 = ssub.s32 128, 128
      %328 = vsyncadd [#allocation5], %s327
      %s330 = sshll.u32 [#allocation4], 4
      %s331 = int_to_ptr.vmem [resolvable:$true] %s330
      %333 = dma.vmem_to_hbm [thread:$0]  %s331, 128, %s6, [#allocation5]
    $region29: #{tpu_custom_call.1} parent=1 // pred_fallthru
      _
    // Predicated region
    $region30: #{tpu_custom_call.1} parent=1 // pred_check
      _
    $region31: #{tpu_custom_call.1} parent=1 // pred_check_branch
      %335 = sbr.rel (0) target = $region33
    $region32: #{tpu_custom_call.1} parent=1 // pred_region
      %336 = dma.done [#allocation3], 128
    $region33: #{tpu_custom_call.1} parent=1 // pred_fallthru
      _
    // Predicated region
    $region34: #{tpu_custom_call.1} parent=1 // pred_check
      _
    $region35: #{tpu_custom_call.1} parent=1 // pred_check_branch
      %338 = sbr.rel (0) target = $region37
    $region36: #{tpu_custom_call.1} parent=1 // pred_region
      %339 = dma.done [#allocation5], 128
    $region37: #{tpu_custom_call.1} parent=1 // pred_fallthru
      _
    %340 = vsyncpa [#allocation3], 1
    %341 = vsyncpa [#allocation5], 1

</llo_original>
